<compile_context>
chip_gen: v7x
topology: tpu7x:2x2x1
jax: 0.10.0
libtpu: 0.0.40
codegen_flags: <defaults>
</compile_context>

<pallas_src>
import functools

import jax
import jax.numpy as jnp
from jax.experimental import pallas as pl
from jax.experimental.pallas import tpu as pltpu

_EPS = 1e-5
_LANE = 128


def _round_up(x, m):
    return (x + m - 1) // m * m


def _compiler_params(dims, est_bytes):
    kwargs = {}
    # Raise the scoped-VMEM limit only when the footprint estimate requires it,
    # capped at 64 MiB so the deepest layers still fit v7x's physical VMEM.
    if est_bytes > 28 * 1024 * 1024:
        kwargs["vmem_limit_bytes"] = int(min(est_bytes * 1.25, 64 * 1024 * 1024))
    return pltpu.CompilerParams(dimension_semantics=dims, **kwargs)


# ----------------------------------------------------------------------------
# Pass 1: tiled im2col GEMM + per-tile BN partial statistics ("parallel" grid)
# ----------------------------------------------------------------------------
def _matmul_stats_kernel(p_ref, w_ref, y_ref, sum_ref, sq_ref):
    # p_ref: (TM, K) patches tile (compute dtype), K packed and padded to 128.
    # w_ref: (K, C)  weight; constant index_map -> stays resident in VMEM.
    # y_ref: (TM, C) raw conv output tile (compute dtype; f32 MXU accumulation)
    # sum_ref / sq_ref: (1, 1, C) per-tile partial statistics (f32).
    acc = jnp.dot(p_ref[...], w_ref[...], preferred_element_type=jnp.float32)
    y_ref[...] = acc.astype(y_ref.dtype)
    ps = jnp.sum(acc, axis=0, keepdims=True)            # (1, C) f32
    pq = jnp.sum(acc * acc, axis=0, keepdims=True)
    sum_ref[...] = ps[None]                              # (1, 1, C)
    sq_ref[...] = pq[None]


def matmul_stats(patches, w2d, *, tile_m, compute_dtype):
    M_pad, K = patches.shape
    C = w2d.shape[1]
    nt = M_pad // tile_m
    isz = jnp.dtype(compute_dtype).itemsize
    est = (2 * tile_m * K + 2 * K * C + 2 * tile_m * C) * isz + tile_m * C * 4
    # TODO(synk): pin the resident weight block to a single buffer
    # (pipeline_mode / one manual copy) to reclaim K*C*dtype of VMEM headroom
    # on the deepest layers (matters on v7x's 64 MiB VMEM).
    return pl.pallas_call(
        _matmul_stats_kernel,
        out_shape=(
            jax.ShapeDtypeStruct((M_pad, C), compute_dtype),   # raw conv out
            jax.ShapeDtypeStruct((nt, 1, C), jnp.float32),     # partial sum
            jax.ShapeDtypeStruct((nt, 1, C), jnp.float32),     # partial sum sq
        ),
        grid=(nt,),
        in_specs=[
            pl.BlockSpec((tile_m, K), lambda i: (i, 0)),       # stream M tiles
            pl.BlockSpec((K, C), lambda i: (0, 0)),            # weight resident
        ],
        out_specs=(
            pl.BlockSpec((tile_m, C), lambda i: (i, 0)),
            pl.BlockSpec((1, 1, C), lambda i: (i, 0, 0)),
            pl.BlockSpec((1, 1, C), lambda i: (i, 0, 0)),
        ),
        compiler_params=_compiler_params(("parallel",), est),
    )(patches.astype(compute_dtype), w2d.astype(compute_dtype))


# ----------------------------------------------------------------------------
# Pass 2: folded BN scale/shift (+ scaled residual) (+ ReLU), fully parallel
# ----------------------------------------------------------------------------
def _epilogue_kernel(apply_relu, y_ref, s_ref, b_ref, o_ref):
    y = y_ref[...].astype(jnp.float32) * s_ref[...] + b_ref[...]
    if apply_relu:
        y = jnp.maximum(y, 0.0)
    o_ref[...] = y.astype(o_ref.dtype)


def _epilogue_res_kernel(apply_relu, y_ref, r_ref, s_ref, b_ref, rs_ref, o_ref):
    y = y_ref[...].astype(jnp.float32) * s_ref[...] + b_ref[...]
    y = y + r_ref[...].astype(jnp.float32) * rs_ref[...]
    if apply_relu:
        y = jnp.maximum(y, 0.0)
    o_ref[...] = y.astype(o_ref.dtype)


def bn_epilogue(y, scale, shift, residual=None, res_scale=None, *,
                apply_relu, tile_m):
    M_pad, C = y.shape
    isz = jnp.dtype(y.dtype).itemsize
    tile = pl.BlockSpec((tile_m, C), lambda i: (i, 0))
    row = pl.BlockSpec((1, C), lambda i: (0, 0))
    if residual is None:
        kernel = functools.partial(_epilogue_kernel, apply_relu)
        in_specs = [tile, row, row]
        args = (y, scale, shift)
        est = 4 * tile_m * C * isz
    else:
        kernel = functools.partial(_epilogue_res_kernel, apply_relu)
        in_specs = [tile, tile, row, row, row]
        args = (y, residual, scale, shift, res_scale)
        est = 6 * tile_m * C * isz
    return pl.pallas_call(
        kernel,
        out_shape=jax.ShapeDtypeStruct((M_pad, C), y.dtype),
        grid=(M_pad // tile_m,),
        in_specs=in_specs,
        out_specs=tile,
        compiler_params=_compiler_params(("parallel",), est),
    )(*args)


# ----------------------------------------------------------------------------
# Glue: K-packed im2col, weight packing, padding, BN stat folding (tiny JAX)
# ----------------------------------------------------------------------------
def _im2col(x_nhwc, kh, kw, stride, padding, k_pad):
    # Taps are packed with the REAL channel count; K is padded once at the end.
    x = jnp.pad(x_nhwc, ((0, 0), (padding, padding), (padding, padding), (0, 0)))
    N, Hp, Wp, C = x.shape
    Ho = (Hp - kh) // stride + 1
    Wo = (Wp - kw) // stride + 1
    cols = []
    for i in range(kh):
        for j in range(kw):
            cols.append(x[:, i:i + stride * Ho:stride, j:j + stride * Wo:stride, :])
    p = jnp.stack(cols, axis=3)                       # (N, Ho, Wo, kh*kw, C)
    p = p.reshape(N * Ho * Wo, kh * kw * C)
    if k_pad > kh * kw * C:
        p = jnp.pad(p, ((0, 0), (0, k_pad - kh * kw * C)))
    return p, (N, Ho, Wo)


def _w2mat(w_oihw, k_pad, cout_pad):
    # (Cout, Cin, KH, KW) -> (K_pad, Cout_pad), tap-major / channel-minor rows
    # matching the im2col column packing above.
    cout, cin, kh, kw = w_oihw.shape
    w = jnp.transpose(w_oihw, (2, 3, 1, 0)).reshape(kh * kw * cin, cout)
    return jnp.pad(w, ((0, k_pad - kh * kw * cin), (0, cout_pad - cout)))


def _pad_rows(a, m_pad):
    m = a.shape[0]
    return a if m == m_pad else jnp.pad(a, ((0, m_pad - m), (0, 0)))


def _pad_vec(v, n):
    return jnp.pad(v, (0, n - v.shape[0]))


def _choose_tile(m, tile_m):
    # Prefer MXU/roofline-friendly multiples of 256; allow small tiles (>=8)
    # when explicitly requested so tiny problems still exercise multi-tile.
    base = 256 if tile_m >= 256 else 8
    tm = min(_round_up(m, base), _round_up(tile_m, base))
    return tm, _round_up(m, tm)


def _bn_scale_shift(psum, psq, count, gamma, beta):
    # Reduce per-tile partials once in f32 (better conditioned than a running
    # accumulator; Welford combine would be the next step for very large M).
    s = jnp.sum(psum, axis=(0, 1))
    q = jnp.sum(psq, axis=(0, 1))
    mean = s / count
    var = jnp.maximum(q / count - mean * mean, 0.0)
    inv = gamma * jax.lax.rsqrt(var + _EPS)       # gamma is zero in pad lanes
    return inv.reshape(1, -1), (beta - mean * inv).reshape(1, -1)


# ----------------------------------------------------------------------------
# Block composition
# ----------------------------------------------------------------------------
def conv3x3_block(x_nhwc, params, stride, *, tile_m, compute_dtype):
    # x_nhwc: (N, H, W, Cin) with only the real channels, compute dtype.
    cin = x_nhwc.shape[-1]
    cout = params["w1"].shape[0]
    cout_pad = _round_up(cout, _LANE)
    x_c = x_nhwc.astype(compute_dtype)

    # --- conv1 (3x3, stride s, pad 1) + BN + ReLU -----------------------------
    k1 = _round_up(9 * cin, _LANE)
    p1, (N, Ho, Wo) = _im2col(x_c, 3, 3, stride, 1, k1)
    M = N * Ho * Wo
    tm, m_pad = _choose_tile(M, tile_m)
    y1, s1, q1 = matmul_stats(_pad_rows(p1, m_pad),
                              _w2mat(params["w1"], k1, cout_pad),
                              tile_m=tm, compute_dtype=compute_dtype)
    sc1, sh1 = _bn_scale_shift(s1, q1, M, _pad_vec(params["g1"], cout_pad),
                               _pad_vec(params["b1"], cout_pad))
    a1 = bn_epilogue(y1, sc1, sh1, apply_relu=True, tile_m=tm)
    # Drop row/lane padding so conv2's K packs only real channels.
    a1_img = a1[:M, :cout].reshape(N, Ho, Wo, cout)

    # --- conv2 (3x3, stride 1, pad 1) -----------------------------------------
    k2 = _round_up(9 * cout, _LANE)
    p2, _ = _im2col(a1_img, 3, 3, 1, 1, k2)
    y2, s2, q2 = matmul_stats(_pad_rows(p2, m_pad),
                              _w2mat(params["w2"], k2, cout_pad),
                              tile_m=tm, compute_dtype=compute_dtype)
    sc2, sh2 = _bn_scale_shift(s2, q2, M, _pad_vec(params["g2"], cout_pad),
                               _pad_vec(params["b2"], cout_pad))

    # --- identity path ---------------------------------------------------------
    if "wd" in params:
        # 1x1 strided downsample; its BN folds into conv2's epilogue as a
        # scaled residual (no extra pallas_call, no zeros residual stream).
        kd = _round_up(cin, _LANE)
        pd, _ = _im2col(x_c, 1, 1, stride, 0, kd)
        yd, sd, qd = matmul_stats(_pad_rows(pd, m_pad),
                                  _w2mat(params["wd"], kd, cout_pad),
                                  tile_m=tm, compute_dtype=compute_dtype)
        res_sc, res_sh = _bn_scale_shift(sd, qd, M,
                                         _pad_vec(params["gd"], cout_pad),
                                         _pad_vec(params["bd"], cout_pad))
        res = yd
    else:
        assert stride == 1 and cin == cout
        res = jnp.pad(x_c.reshape(M, cin),
                      ((0, m_pad - M), (0, cout_pad - cin)))
        res_sc = jnp.ones((1, cout_pad), jnp.float32)
        res_sh = jnp.zeros((1, cout_pad), jnp.float32)

    # Fold shift + res_shift into a single vector before the store-bound pass.
    out = bn_epilogue(y2, sc2, sh2 + res_sh, res, res_sc,
                      apply_relu=True, tile_m=tm)
    return out[:M, :cout].reshape(N, Ho, Wo, cout)


def block2d_forward(x_nchw, params1, params2, stride=2, *,
                    tile_m=512, compute_dtype=jnp.bfloat16):
    x = jnp.transpose(x_nchw, (0, 2, 3, 1))                       # NCHW -> NHWC
    x = conv3x3_block(x.astype(compute_dtype), params1, stride,
                      tile_m=tile_m, compute_dtype=compute_dtype)
    x = conv3x3_block(x, params2, 1, tile_m=tile_m,
                      compute_dtype=compute_dtype)
    return jnp.transpose(x, (0, 3, 1, 2)).astype(jnp.float32)     # NHWC -> NCHW


# ----------------------------------------------------------------------------
# Deterministic parameter init (synthetic, matches the module's shapes)
# ----------------------------------------------------------------------------
def init_conv3x3_params(key, cin, cout, stride):
    ks = jax.random.split(key, 9)
    p = {
        "w1": 0.2 * jax.random.normal(ks[0], (cout, cin, 3, 3), jnp.float32),
        "g1": 1.0 + 0.1 * jax.random.normal(ks[1], (cout,), jnp.float32),
        "b1": 0.1 * jax.random.normal(ks[2], (cout,), jnp.float32),
        "w2": 0.2 * jax.random.normal(ks[3], (cout, cout, 3, 3), jnp.float32),
        "g2": 1.0 + 0.1 * jax.random.normal(ks[4], (cout,), jnp.float32),
        "b2": 0.1 * jax.random.normal(ks[5], (cout,), jnp.float32),
    }
    if stride > 1 or cin != cout:
        p["wd"] = 0.2 * jax.random.normal(ks[6], (cout, cin, 1, 1), jnp.float32)
        p["gd"] = 1.0 + 0.1 * jax.random.normal(ks[7], (cout,), jnp.float32)
        p["bd"] = 0.1 * jax.random.normal(ks[8], (cout,), jnp.float32)
    return p


# ----------------------------------------------------------------------------
# Pure-JAX reference (training-mode BatchNorm, matches the PyTorch module)
# ----------------------------------------------------------------------------
def _ref_conv(x, w, stride, padding):
    return jax.lax.conv_general_dilated(
        x, w, (stride, stride), [(padding, padding)] * 2,
        dimension_numbers=("NCHW", "OIHW", "NCHW"),
        precision=jax.lax.Precision.HIGHEST)


def _ref_bn(x, g, b):
    mean = x.mean(axis=(0, 2, 3), keepdims=True)
    var = x.var(axis=(0, 2, 3), keepdims=True)        # biased, training-mode BN
    y = (x - mean) / jnp.sqrt(var + _EPS)
    return y * g.reshape(1, -1, 1, 1) + b.reshape(1, -1, 1, 1)


def _ref_conv3x3(x, p, stride):
    idn = x
    y = jax.nn.relu(_ref_bn(_ref_conv(x, p["w1"], stride, 1), p["g1"], p["b1"]))
    y = _ref_bn(_ref_conv(y, p["w2"], 1, 1), p["g2"], p["b2"])
    if "wd" in p:
        idn = _ref_bn(_ref_conv(idn, p["wd"], stride, 0), p["gd"], p["bd"])
    return jax.nn.relu(idn + y)


def _ref_block2d(x, p1, p2, stride=2):
    return _ref_conv3x3(_ref_conv3x3(x, p1, stride), p2, 1)


# ----------------------------------------------------------------------------
if __name__ == "__main__":
    key = jax.random.PRNGKey(0)
    kx, k1, k2 = jax.random.split(key, 3)

    N, Cin, H, W = 2, 4, 16, 16
    Cout, stride = 8, 2

    x = jax.random.normal(kx, (N, Cin, H, W), jnp.float32)
    params1 = init_conv3x3_params(k1, Cin, Cout, stride)
    params2 = init_conv3x3_params(k2, Cout, Cout, 1)

    ref = _ref_block2d(x, params1, params2, stride)

    # f32 MXU path with a small tile (64) so the grid has several M tiles and
    # the per-tile partial-statistics reduction is exercised.
    fwd_f32 = jax.jit(functools.partial(block2d_forward, stride=stride,
                                        tile_m=64, compute_dtype=jnp.float32))
    out_f32 = jax.block_until_ready(fwd_f32(x, params1, params2))
    assert out_f32.shape == (N, Cout, H // stride, W // stride), out_f32.shape
    err_f32 = float(jnp.max(jnp.abs(out_f32 - ref)))
    assert err_f32 < 5e-2, f"f32 mismatch vs reference: {err_f32}"

    # Default path: bf16 MXU operands and bf16 intermediates, f32 accumulation.
    fwd_bf16 = jax.jit(functools.partial(block2d_forward, stride=stride))
    out_bf16 = jax.block_until_ready(fwd_bf16(x, params1, params2))
    err_bf16 = float(jnp.max(jnp.abs(out_bf16 - ref)))
    assert err_bf16 < 2.5e-1, f"bf16 mismatch vs reference: {err_bf16}"

    print("KERNEL_OK")
</pallas_src>

<mosaic_0001>
module attributes {stable_mosaic.version = 11 : i64} {
  func.func @_matmul_stats_kernel(%arg0: i32, %arg1: memref<64x128xf32, #tpu.memory_space<vmem>>, %arg2: memref<128x128xf32, #tpu.memory_space<vmem>>, %arg3: memref<64x128xf32, #tpu.memory_space<vmem>>, %arg4: memref<1x1x128xf32, #tpu.memory_space<vmem>>, %arg5: memref<1x1x128xf32, #tpu.memory_space<vmem>>) attributes {dimension_semantics = [#tpu.dimension_semantics<parallel>], iteration_bounds = array<i64: 2>, scalar_prefetch = 0 : i64, scratch_operands = 0 : i64, tpu.core_type = #tpu.core_type<tc>, window_params = [{transform_indices = @transform_0, window_bounds = array<i64: 64, 128>}, {pipeline_mode = #tpu.pipeline_mode<synchronous>, transform_indices = @transform_1, window_bounds = array<i64: 128, 128>}, {transform_indices = @transform_2, window_bounds = array<i64: 64, 128>}, {transform_indices = @transform_3, window_bounds = array<i64: 1, 1, 128>}, {transform_indices = @transform_4, window_bounds = array<i64: 1, 1, 128>}]} {
    %c0 = arith.constant 0 : index
    %c0_0 = arith.constant 0 : index
    %0 = vector.load %arg1[%c0, %c0_0] : memref<64x128xf32, #tpu.memory_space<vmem>>, vector<64x128xf32>
    %c0_1 = arith.constant 0 : index
    %c0_2 = arith.constant 0 : index
    %1 = vector.load %arg2[%c0_1, %c0_2] : memref<128x128xf32, #tpu.memory_space<vmem>>, vector<128x128xf32>
    %cst = arith.constant dense<0.000000e+00> : vector<64x128xf32>
    %2 = tpu.matmul %0, %1, %cst {dimension_numbers = #tpu.dot_dimension_numbers<[1], [0], [0], [1], [0, 0, 1, 1], [], []>} : vector<64x128xf32>, vector<128x128xf32>, vector<64x128xf32> -> vector<64x128xf32>
    %c0_3 = arith.constant 0 : index
    %c0_4 = arith.constant 0 : index
    %3 = vector.load %arg3[%c0_3, %c0_4] : memref<64x128xf32, #tpu.memory_space<vmem>>, vector<64x128xf32>
    tpu.vector_store %arg3[%c0_3, %c0_4], %2 {strides = array<i32>} : memref<64x128xf32, #tpu.memory_space<vmem>>, vector<64x128xf32>,
    %cst_5 = arith.constant dense<0.000000e+00> : vector<128xf32>
    %4 = vector.multi_reduction <add>, %2, %cst_5 [0] : vector<64x128xf32> to vector<128xf32>
    %5 = vector.shape_cast %4 : vector<128xf32> to vector<1x128xf32>
    %6 = arith.mulf %2, %2 : vector<64x128xf32>
    %cst_6 = arith.constant dense<0.000000e+00> : vector<128xf32>
    %7 = vector.multi_reduction <add>, %6, %cst_6 [0] : vector<64x128xf32> to vector<128xf32>
    %8 = vector.shape_cast %7 : vector<128xf32> to vector<1x128xf32>
    %9 = vector.shape_cast %5 : vector<1x128xf32> to vector<1x1x128xf32>
    %c0_7 = arith.constant 0 : index
    %c0_8 = arith.constant 0 : index
    %c0_9 = arith.constant 0 : index
    %10 = vector.load %arg4[%c0_7, %c0_8, %c0_9] : memref<1x1x128xf32, #tpu.memory_space<vmem>>, vector<1x1x128xf32>
    tpu.vector_store %arg4[%c0_7, %c0_8, %c0_9], %9 {strides = array<i32>} : memref<1x1x128xf32, #tpu.memory_space<vmem>>, vector<1x1x128xf32>,
    %11 = vector.shape_cast %8 : vector<1x128xf32> to vector<1x1x128xf32>
    %c0_10 = arith.constant 0 : index
    %c0_11 = arith.constant 0 : index
    %c0_12 = arith.constant 0 : index
    %12 = vector.load %arg5[%c0_10, %c0_11, %c0_12] : memref<1x1x128xf32, #tpu.memory_space<vmem>>, vector<1x1x128xf32>
    tpu.vector_store %arg5[%c0_10, %c0_11, %c0_12], %11 {strides = array<i32>} : memref<1x1x128xf32, #tpu.memory_space<vmem>>, vector<1x1x128xf32>,
    return
  }
  func.func @transform_0(%arg0: i32) -> (i32, i32) {
    %c0_i32 = arith.constant 0 : i32
    %c0_i32_0 = arith.constant 0 : i32
    return %arg0, %c0_i32 : i32, i32
  }
  func.func @transform_1(%arg0: i32) -> (i32, i32) {
    %c0_i32 = arith.constant 0 : i32
    %c0_i32_0 = arith.constant 0 : i32
    %c0_i32_1 = arith.constant 0 : i32
    return %c0_i32, %c0_i32_0 : i32, i32
  }
  func.func @transform_2(%arg0: i32) -> (i32, i32) {
    %c0_i32 = arith.constant 0 : i32
    %c0_i32_0 = arith.constant 0 : i32
    return %arg0, %c0_i32 : i32, i32
  }
  func.func @transform_3(%arg0: i32) -> (i32, i32, i32) {
    %c0_i32 = arith.constant 0 : i32
    %c0_i32_0 = arith.constant 0 : i32
    %c0_i32_1 = arith.constant 0 : i32
    return %arg0, %c0_i32, %c0_i32_0 : i32, i32, i32
  }
  func.func @transform_4(%arg0: i32) -> (i32, i32, i32) {
    %c0_i32 = arith.constant 0 : i32
    %c0_i32_0 = arith.constant 0 : i32
    %c0_i32_1 = arith.constant 0 : i32
    return %arg0, %c0_i32, %c0_i32_0 : i32, i32, i32
  }
}

module attributes {stable_mosaic.version = 11 : i64} {
  func.func @_epilogue_kernel(%arg0: i32, %arg1: memref<64x128xf32, #tpu.memory_space<vmem>>, %arg2: memref<1x128xf32, #tpu.memory_space<vmem>>, %arg3: memref<1x128xf32, #tpu.memory_space<vmem>>, %arg4: memref<64x128xf32, #tpu.memory_space<vmem>>) attributes {dimension_semantics = [#tpu.dimension_semantics<parallel>], iteration_bounds = array<i64: 2>, scalar_prefetch = 0 : i64, scratch_operands = 0 : i64, tpu.core_type = #tpu.core_type<tc>, window_params = [{transform_indices = @transform_0, window_bounds = array<i64: 64, 128>}, {pipeline_mode = #tpu.pipeline_mode<synchronous>, transform_indices = @transform_1, window_bounds = array<i64: 1, 128>}, {pipeline_mode = #tpu.pipeline_mode<synchronous>, transform_indices = @transform_2, window_bounds = array<i64: 1, 128>}, {transform_indices = @transform_3, window_bounds = array<i64: 64, 128>}]} {
    %c0 = arith.constant 0 : index
    %c0_0 = arith.constant 0 : index
    %0 = vector.load %arg1[%c0, %c0_0] : memref<64x128xf32, #tpu.memory_space<vmem>>, vector<64x128xf32>
    %c0_1 = arith.constant 0 : index
    %c0_2 = arith.constant 0 : index
    %1 = vector.load %arg2[%c0_1, %c0_2] : memref<1x128xf32, #tpu.memory_space<vmem>>, vector<1x128xf32>
    %2 = vector.broadcast %1 : vector<1x128xf32> to vector<64x128xf32>
    %3 = arith.mulf %0, %2 : vector<64x128xf32>
    %c0_3 = arith.constant 0 : index
    %c0_4 = arith.constant 0 : index
    %4 = vector.load %arg3[%c0_3, %c0_4] : memref<1x128xf32, #tpu.memory_space<vmem>>, vector<1x128xf32>
    %5 = vector.broadcast %4 : vector<1x128xf32> to vector<64x128xf32>
    %6 = arith.addf %3, %5 : vector<64x128xf32>
    %cst = arith.constant 0.000000e+00 : f32
    %7 = vector.broadcast %cst : f32 to vector<64x128xf32>
    %8 = arith.maximumf %6, %7 : vector<64x128xf32>
    %c0_5 = arith.constant 0 : index
    %c0_6 = arith.constant 0 : index
    %9 = vector.load %arg4[%c0_5, %c0_6] : memref<64x128xf32, #tpu.memory_space<vmem>>, vector<64x128xf32>
    tpu.vector_store %arg4[%c0_5, %c0_6], %8 {strides = array<i32>} : memref<64x128xf32, #tpu.memory_space<vmem>>, vector<64x128xf32>,
    return
  }
  func.func @transform_0(%arg0: i32) -> (i32, i32) {
    %c0_i32 = arith.constant 0 : i32
    %c0_i32_0 = arith.constant 0 : i32
    return %arg0, %c0_i32 : i32, i32
  }
  func.func @transform_1(%arg0: i32) -> (i32, i32) {
    %c0_i32 = arith.constant 0 : i32
    %c0_i32_0 = arith.constant 0 : i32
    %c0_i32_1 = arith.constant 0 : i32
    return %c0_i32, %c0_i32_0 : i32, i32
  }
  func.func @transform_2(%arg0: i32) -> (i32, i32) {
    %c0_i32 = arith.constant 0 : i32
    %c0_i32_0 = arith.constant 0 : i32
    %c0_i32_1 = arith.constant 0 : i32
    return %c0_i32, %c0_i32_0 : i32, i32
  }
  func.func @transform_3(%arg0: i32) -> (i32, i32) {
    %c0_i32 = arith.constant 0 : i32
    %c0_i32_0 = arith.constant 0 : i32
    return %arg0, %c0_i32 : i32, i32
  }
}

module attributes {stable_mosaic.version = 11 : i64} {
  func.func @_epilogue_res_kernel(%arg0: i32, %arg1: memref<64x128xf32, #tpu.memory_space<vmem>>, %arg2: memref<64x128xf32, #tpu.memory_space<vmem>>, %arg3: memref<1x128xf32, #tpu.memory_space<vmem>>, %arg4: memref<1x128xf32, #tpu.memory_space<vmem>>, %arg5: memref<1x128xf32, #tpu.memory_space<vmem>>, %arg6: memref<64x128xf32, #tpu.memory_space<vmem>>) attributes {dimension_semantics = [#tpu.dimension_semantics<parallel>], iteration_bounds = array<i64: 2>, scalar_prefetch = 0 : i64, scratch_operands = 0 : i64, tpu.core_type = #tpu.core_type<tc>, window_params = [{transform_indices = @transform_0, window_bounds = array<i64: 64, 128>}, {transform_indices = @transform_1, window_bounds = array<i64: 64, 128>}, {pipeline_mode = #tpu.pipeline_mode<synchronous>, transform_indices = @transform_2, window_bounds = array<i64: 1, 128>}, {pipeline_mode = #tpu.pipeline_mode<synchronous>, transform_indices = @transform_3, window_bounds = array<i64: 1, 128>}, {pipeline_mode = #tpu.pipeline_mode<synchronous>, transform_indices = @transform_4, window_bounds = array<i64: 1, 128>}, {transform_indices = @transform_5, window_bounds = array<i64: 64, 128>}]} {
    %c0 = arith.constant 0 : index
    %c0_0 = arith.constant 0 : index
    %0 = vector.load %arg1[%c0, %c0_0] : memref<64x128xf32, #tpu.memory_space<vmem>>, vector<64x128xf32>
    %c0_1 = arith.constant 0 : index
    %c0_2 = arith.constant 0 : index
    %1 = vector.load %arg3[%c0_1, %c0_2] : memref<1x128xf32, #tpu.memory_space<vmem>>, vector<1x128xf32>
    %2 = vector.broadcast %1 : vector<1x128xf32> to vector<64x128xf32>
    %3 = arith.mulf %0, %2 : vector<64x128xf32>
    %c0_3 = arith.constant 0 : index
    %c0_4 = arith.constant 0 : index
    %4 = vector.load %arg4[%c0_3, %c0_4] : memref<1x128xf32, #tpu.memory_space<vmem>>, vector<1x128xf32>
    %5 = vector.broadcast %4 : vector<1x128xf32> to vector<64x128xf32>
    %6 = arith.addf %3, %5 : vector<64x128xf32>
    %c0_5 = arith.constant 0 : index
    %c0_6 = arith.constant 0 : index
    %7 = vector.load %arg2[%c0_5, %c0_6] : memref<64x128xf32, #tpu.memory_space<vmem>>, vector<64x128xf32>
    %c0_7 = arith.constant 0 : index
    %c0_8 = arith.constant 0 : index
    %8 = vector.load %arg5[%c0_7, %c0_8] : memref<1x128xf32, #tpu.memory_space<vmem>>, vector<1x128xf32>
    %9 = vector.broadcast %8 : vector<1x128xf32> to vector<64x128xf32>
    %10 = arith.mulf %7, %9 : vector<64x128xf32>
    %11 = arith.addf %6, %10 : vector<64x128xf32>
    %cst = arith.constant 0.000000e+00 : f32
    %12 = vector.broadcast %cst : f32 to vector<64x128xf32>
    %13 = arith.maximumf %11, %12 : vector<64x128xf32>
    %c0_9 = arith.constant 0 : index
    %c0_10 = arith.constant 0 : index
    %14 = vector.load %arg6[%c0_9, %c0_10] : memref<64x128xf32, #tpu.memory_space<vmem>>, vector<64x128xf32>
    tpu.vector_store %arg6[%c0_9, %c0_10], %13 {strides = array<i32>} : memref<64x128xf32, #tpu.memory_space<vmem>>, vector<64x128xf32>,
    return
  }
  func.func @transform_0(%arg0: i32) -> (i32, i32) {
    %c0_i32 = arith.constant 0 : i32
    %c0_i32_0 = arith.constant 0 : i32
    return %arg0, %c0_i32 : i32, i32
  }
  func.func @transform_1(%arg0: i32) -> (i32, i32) {
    %c0_i32 = arith.constant 0 : i32
    %c0_i32_0 = arith.constant 0 : i32
    return %arg0, %c0_i32 : i32, i32
  }
  func.func @transform_2(%arg0: i32) -> (i32, i32) {
    %c0_i32 = arith.constant 0 : i32
    %c0_i32_0 = arith.constant 0 : i32
    %c0_i32_1 = arith.constant 0 : i32
    return %c0_i32, %c0_i32_0 : i32, i32
  }
  func.func @transform_3(%arg0: i32) -> (i32, i32) {
    %c0_i32 = arith.constant 0 : i32
    %c0_i32_0 = arith.constant 0 : i32
    %c0_i32_1 = arith.constant 0 : i32
    return %c0_i32, %c0_i32_0 : i32, i32
  }
  func.func @transform_4(%arg0: i32) -> (i32, i32) {
    %c0_i32 = arith.constant 0 : i32
    %c0_i32_0 = arith.constant 0 : i32
    %c0_i32_1 = arith.constant 0 : i32
    return %c0_i32, %c0_i32_0 : i32, i32
  }
  func.func @transform_5(%arg0: i32) -> (i32, i32) {
    %c0_i32 = arith.constant 0 : i32
    %c0_i32_0 = arith.constant 0 : i32
    return %arg0, %c0_i32 : i32, i32
  }
}

</mosaic_0001>

<llo_original>
// kernel: block2d_forward.10
$region0: #{block2d_forward.10}
  #allocation0 [shape = 'u32[]', space=smem, size = 0x4, offset = 0x4, fixed_abs, tag = 'smem constant byte address 0x4 - core index']
  #allocation1 [shape = 'u32[144,128]{1,0:T(1,128)}', space=vmem, size = 0x12000, scoped, tag = 'internal scratch']
  %s0 = inlined_call_operand.vmem [shape: f32[128,128], index: 0, kind: input, shape index: {}]
  %s1 = inlined_call_operand.vmem [shape: f32[1,128], index: 1, kind: input, shape index: {}]
  %s2 = inlined_call_operand.vmem [shape: f32[1,128], index: 2, kind: input, shape index: {}]
  %s3 = inlined_call_operand.vmem [shape: f32[128,128], index: 3, kind: output, shape index: {}]
  %s4 = sld [smem:[#allocation0]]
  $region45: #{block2d_forward.10} parent=0
    _
  %s6 = ssub.s32 1, %s4
  %s7 = scalar_select 0, %s6, %s4
  loop: start=0, step=1, limit=4
  $region2: #{block2d_forward.10} parent=0 // loop_pre_header
    _
  $region3: #{block2d_forward.10} parent=0 // loop_header
    %s9 = sphi 0, %s13
    %p10 = scmp.ge.s32.totalorder %s9, 4
    %s19 = sphi 0, %s21
    %s22 = sphi 0, %s19
    %s23 = sphi 0, %s22
    %s39 = sphi 0, %s23
    %s43 = sphi 0, %s43
    %s45 = sphi 0, %s43
    %s46 = sphi 0, %s45
    %s60 = sphi 0, %s46
    %s64 = sphi 0, %s64
    %s66 = sphi 0, %s64
    %s67 = sphi 0, %s66
    %s81 = sphi 0, %s67
    %s87 = sphi 0, %s89
    %s90 = sphi 0, %s87
    %s91 = sphi 0, %s90
    %s107 = sphi 0, %s91
  $region4: #{block2d_forward.10} parent=0 // loop_header_branch
    %12 = sbr.rel (%p10) target = $region8
  $region5: #{block2d_forward.10} parent=0 // loop_body
    %s14 = ssub.s32 %s9, 1
    %s15 = ssub.s32 %s9, 2
    %s16 = sadd.s32 %s9, 1
    %s17 = ssub.s32 %s9, %s16
    %p18 = scmp.eq.s32.totalorder %s17, 0
    %s20 = sadd.s32 %s19, 1
    %s21 = scalar_select %p18, %s19, %s20
    %p24 = pneg %p18
    %p25 = scmp.eq.s32.totalorder %s9, 1
    %p26 = por %p24, %p25
    %p27 = scmp.ne.s32.totalorder %s19, %s22
    %p28 = scmp.eq.s32.totalorder %s9, 0
    %p29 = por %p27, %p28
    %p30 = scmp.ne.s32.totalorder %s19, %s22
    %p31 = scmp.eq.s32.totalorder %s14, 1
    %p32 = por %p30, %p31
    %p33 = scmp.ne.s32.totalorder %s22, %s23
    %p34 = scmp.eq.s32.totalorder %s14, 0
    %p35 = por %p33, %p34
    %p36 = scmp.ne.s32.totalorder %s22, %s23
    %p37 = scmp.eq.s32.totalorder %s15, 1
    %p38 = por %p36, %p37
    %p40 = scmp.ne.s32.totalorder %s23, %s39
    %p41 = scmp.eq.s32.totalorder %s15, 0
    %p42 = por %p40, %p41
    %s44 = sadd.s32 %s43, 1
    %p47 = scmp.eq.s32.totalorder %s9, 1
    %p48 = scmp.ne.s32.totalorder %s43, %s45
    %p49 = scmp.eq.s32.totalorder %s9, 0
    %p50 = por %p48, %p49
    %p51 = scmp.ne.s32.totalorder %s43, %s45
    %p52 = scmp.eq.s32.totalorder %s14, 1
    %p53 = por %p51, %p52
    %p54 = scmp.ne.s32.totalorder %s45, %s46
    %p55 = scmp.eq.s32.totalorder %s14, 0
    %p56 = por %p54, %p55
    %p57 = scmp.ne.s32.totalorder %s45, %s46
    %p58 = scmp.eq.s32.totalorder %s15, 1
    %p59 = por %p57, %p58
    %p61 = scmp.ne.s32.totalorder %s46, %s60
    %p62 = scmp.eq.s32.totalorder %s15, 0
    %p63 = por %p61, %p62
    %s65 = sadd.s32 %s64, 1
    %p68 = scmp.eq.s32.totalorder %s9, 1
    %p69 = scmp.ne.s32.totalorder %s64, %s66
    %p70 = scmp.eq.s32.totalorder %s9, 0
    %p71 = por %p69, %p70
    %p72 = scmp.ne.s32.totalorder %s64, %s66
    %p73 = scmp.eq.s32.totalorder %s14, 1
    %p74 = por %p72, %p73
    %p75 = scmp.ne.s32.totalorder %s66, %s67
    %p76 = scmp.eq.s32.totalorder %s14, 0
    %p77 = por %p75, %p76
    %p78 = scmp.ne.s32.totalorder %s66, %s67
    %p79 = scmp.eq.s32.totalorder %s15, 1
    %p80 = por %p78, %p79
    %p82 = scmp.ne.s32.totalorder %s67, %s81
    %p83 = scmp.eq.s32.totalorder %s15, 0
    %p84 = por %p82, %p83
    %s85 = ssub.s32 %s9, %s16
    %p86 = scmp.eq.s32.totalorder %s85, 0
    %s88 = sadd.s32 %s87, 1
    %s89 = scalar_select %p86, %s87, %s88
    %p92 = pneg %p86
    %p93 = scmp.eq.s32.totalorder %s9, 1
    %p94 = por %p92, %p93
    %p95 = scmp.ne.s32.totalorder %s87, %s90
    %p96 = scmp.eq.s32.totalorder %s9, 0
    %p97 = por %p95, %p96
    %p98 = scmp.ne.s32.totalorder %s87, %s90
    %p99 = scmp.eq.s32.totalorder %s14, 1
    %p100 = por %p98, %p99
    %p101 = scmp.ne.s32.totalorder %s90, %s91
    %p102 = scmp.eq.s32.totalorder %s14, 0
    %p103 = por %p101, %p102
    %p104 = scmp.ne.s32.totalorder %s90, %s91
    %p105 = scmp.eq.s32.totalorder %s15, 1
    %p106 = por %p104, %p105
    %p108 = scmp.ne.s32.totalorder %s91, %s107
    %p109 = scmp.eq.s32.totalorder %s15, 0
    %p110 = por %p108, %p109
    %p111 = scmp.le.s32.totalorder 1, %s9
    %p112 = scmp.lt.s32.totalorder %s9, 3
    %p113 = pnand %p111, %p112
    %p114 = pneg %p113
    // Predicated region
    $region9: #{block2d_forward.10} parent=5 // pred_check
      _
    $region10: #{block2d_forward.10} parent=5 // pred_check_branch
      %116 = sbr.rel (%p113) target = $region12
    $region11: #{block2d_forward.10} parent=5 // pred_region
      %s117 = ssub.s32 %s9, 1
      // Predicated region
      $region13: #{block2d_forward.10} parent=11 // pred_check
        %p118 = pneg %p56
      $region14: #{block2d_forward.10} parent=11 // pred_check_branch
        %120 = sbr.rel (%p118) target = $region16
      $region15: #{block2d_forward.10} parent=11 // pred_region
        _
      $region16: #{block2d_forward.10} parent=11 // pred_fallthru
        _
      // Predicated region
      $region17: #{block2d_forward.10} parent=11 // pred_check
        %p121 = pneg %p77
      $region18: #{block2d_forward.10} parent=11 // pred_check_branch
        %123 = sbr.rel (%p121) target = $region20
      $region19: #{block2d_forward.10} parent=11 // pred_region
        _
      $region20: #{block2d_forward.10} parent=11 // pred_fallthru
        _
    $region12: #{block2d_forward.10} parent=5 // pred_fallthru
      _
    %p124 = scmp.lt.s32.totalorder %s9, 2
    // Predicated region
    $region21: #{block2d_forward.10} parent=5 // pred_check
      %p125 = pneg %p124
    $region22: #{block2d_forward.10} parent=5 // pred_check_branch
      %127 = sbr.rel (%p125) target = $region24
    $region23: #{block2d_forward.10} parent=5 // pred_region
      // Predicated region
      $region25: #{block2d_forward.10} parent=23 // pred_check
        %p128 = pneg %p29
      $region26: #{block2d_forward.10} parent=23 // pred_check_branch
        %130 = sbr.rel (%p128) target = $region28
      $region27: #{block2d_forward.10} parent=23 // pred_region
        %s131 = smul.u32 8, %s9
        %p132 = scmp.lt.s32.totalorder %s131, 15
        %s133 = scalar_select %p132, %s131, 15
        %s134 = smul.addr %s133, 8
        %s135 = scalar_lea.vmem %s0, %s134
        %s136 = smul.u32 8, %s9
      $region28: #{block2d_forward.10} parent=23 // pred_fallthru
        _
    $region24: #{block2d_forward.10} parent=5 // pred_fallthru
      _
    %p137 = scmp.le.s32.totalorder 1, %s9
    %p138 = scmp.lt.s32.totalorder %s9, 3
    %p139 = pnand %p137, %p138
    %p140 = pneg %p139
    // Predicated region
    $region29: #{block2d_forward.10} parent=5 // pred_check
      _
    $region30: #{block2d_forward.10} parent=5 // pred_check_branch
      %142 = sbr.rel (%p139) target = $region32
    $region31: #{block2d_forward.10} parent=5 // pred_region
      %s143 = ssub.s32 %s9, 1
      %s144 = smul.u32 8, %s14
      %p145 = scmp.lt.s32.totalorder %s144, 15
      %s146 = scalar_select %p145, %s144, 15
      %s147 = smul.addr %s146, 8
      %s148 = scalar_lea.vmem %s0, %s147
      %p149 = pneg %p35
      %p150 = pneg %p32
      %p151 = pneg %p56
      %p152 = pneg %p53
      %p153 = pneg %p77
      %p154 = pneg %p74
      %p155 = pneg %p103
      %p156 = pneg %p100
      %s157 = smul.u32 8, %s14
      %p158 = scmp.lt.s32.totalorder %s157, 15
      %s159 = scalar_select %p158, %s157, 15
      %s160 = smul.addr %s159, 8
      %s161 = scalar_lea.vmem %s3, %s160
      %s162 = smul.u32 8, %s14
      %p163 = scmp.lt.s32.totalorder %s162, 15
      %s164 = scalar_select %p163, %s162, 15
      %s165 = smul.addr %s164, 8
      %s166 = scalar_lea.vmem %s0, %s165
      %s167 = smul.u32 8, %s14
      %s168 = smul.u32 8, %s14
      %p169 = scmp.lt.s32.totalorder %s168, 15
      %s170 = scalar_select %p169, %s168, 15
      %s171 = smul.addr %s170, 8
      %s172 = scalar_lea.vmem %s3, %s171
      %s173 = smul.u32 8, %s14
      %v174 = vld [vmem:[%s166] sm:$0xff]
      %v175 = vld [vmem:[%s166 + $0x8] sm:$0xff]
      %v176 = vld [vmem:[%s166 + $0x10] sm:$0xff]
      %v177 = vld [vmem:[%s166 + $0x18] sm:$0xff]
      %v178 = vld [vmem:[%s166 + $0x20] sm:$0xff]
      %v179 = vld [vmem:[%s166 + $0x28] sm:$0xff]
      %v180 = vld [vmem:[%s166 + $0x30] sm:$0xff]
      %v181 = vld [vmem:[%s166 + $0x38] sm:$0xff]
      %v182 = vld [vmem:[%s1] sm:$0x1]
      %v184 = vlaneseq
      %v185 = vshrl.u32 %v184, 7
      %v186 = vsub.s32 0, %v185
      %v187 = vrot.slane %v182, %v186
      %v189 = vmul.f32 %v174, %v187
      %v190 = vmul.f32 %v175, %v187
      %v191 = vmul.f32 %v176, %v187
      %v192 = vmul.f32 %v177, %v187
      %v193 = vmul.f32 %v178, %v187
      %v194 = vmul.f32 %v179, %v187
      %v195 = vmul.f32 %v180, %v187
      %v196 = vmul.f32 %v181, %v187
      %v197 = vld [vmem:[%s2] sm:$0x1]
      %v199 = vlaneseq
      %v200 = vshrl.u32 %v199, 7
      %v201 = vsub.s32 0, %v200
      %v202 = vrot.slane %v197, %v201
      %v204 = vadd.f32 %v189, %v202
      %v205 = vadd.f32 %v190, %v202
      %v206 = vadd.f32 %v191, %v202
      %v207 = vadd.f32 %v192, %v202
      %v208 = vadd.f32 %v193, %v202
      %v209 = vadd.f32 %v194, %v202
      %v210 = vadd.f32 %v195, %v202
      %v211 = vadd.f32 %v196, %v202
      %v212 = vmax.f32 %v204, 0.0
      %v213 = vmax.f32 %v205, 0.0
      %v214 = vmax.f32 %v206, 0.0
      %v215 = vmax.f32 %v207, 0.0
      %v216 = vmax.f32 %v208, 0.0
      %v217 = vmax.f32 %v209, 0.0
      %v218 = vmax.f32 %v210, 0.0
      %v219 = vmax.f32 %v211, 0.0
      %220 = vst [vmem:[%s172] sm:$0xff] %v212
      %221 = vst [vmem:[%s172 + $0x8] sm:$0xff] %v213
      %222 = vst [vmem:[%s172 + $0x10] sm:$0xff] %v214
      %223 = vst [vmem:[%s172 + $0x18] sm:$0xff] %v215
      %224 = vst [vmem:[%s172 + $0x20] sm:$0xff] %v216
      %225 = vst [vmem:[%s172 + $0x28] sm:$0xff] %v217
      %226 = vst [vmem:[%s172 + $0x30] sm:$0xff] %v218
      %227 = vst [vmem:[%s172 + $0x38] sm:$0xff] %v219
      %s228 = smul.u32 8, %s14
      %p229 = scmp.lt.s32.totalorder %s228, 15
      %s230 = scalar_select %p229, %s228, 15
      %s231 = smul.addr %s230, 8
      %s232 = scalar_lea.vmem %s3, %s231
      // Predicated region
      $region33: #{block2d_forward.10} parent=31 // pred_check
        %p233 = pneg %p100
      $region34: #{block2d_forward.10} parent=31 // pred_check_branch
        %235 = sbr.rel (%p233) target = $region36
      $region35: #{block2d_forward.10} parent=31 // pred_region
        %s236 = smul.u32 8, %s14
      $region36: #{block2d_forward.10} parent=31 // pred_fallthru
        _
    $region32: #{block2d_forward.10} parent=5 // pred_fallthru
      _
    %p237 = scmp.le.s32.totalorder 2, %s9
    // Predicated region
    $region37: #{block2d_forward.10} parent=5 // pred_check
      %p238 = pneg %p237
    $region38: #{block2d_forward.10} parent=5 // pred_check_branch
      %240 = sbr.rel (%p238) target = $region40
    $region39: #{block2d_forward.10} parent=5 // pred_region
      %s241 = ssub.s32 %s9, 2
      // Predicated region
      $region41: #{block2d_forward.10} parent=39 // pred_check
        %p242 = pneg %p106
      $region42: #{block2d_forward.10} parent=39 // pred_check_branch
        %244 = sbr.rel (%p242) target = $region44
      $region43: #{block2d_forward.10} parent=39 // pred_region
        %s245 = smul.u32 8, %s15
        %p246 = scmp.lt.s32.totalorder %s245, 15
        %s247 = scalar_select %p246, %s245, 15
        %s248 = smul.addr %s247, 8
        %s249 = scalar_lea.vmem %s3, %s248
      $region44: #{block2d_forward.10} parent=39 // pred_fallthru
        _
    $region40: #{block2d_forward.10} parent=5 // pred_fallthru
      _
  $region6: #{block2d_forward.10} parent=0 // loop_footer
    %s13 = sadd.s32 1, %s9
  $region7: #{block2d_forward.10} parent=0 // loop_footer_branch
    %8 = sbr.rel target = $region3
  $region8: #{block2d_forward.10} parent=0 // loop_exit
    _

// kernel: block2d_forward.9
$region0: #{block2d_forward.9}
  #allocation0 [shape = 'u32[]', space=smem, size = 0x4, offset = 0x4, fixed_abs, tag = 'smem constant byte address 0x4 - core index']
  #allocation1 [shape = 'u32[144,128]{1,0:T(1,128)}', space=vmem, size = 0x12000, scoped, tag = 'internal scratch']
  %s0 = inlined_call_operand.vmem [shape: f32[128,128], index: 0, kind: input, shape index: {}]
  %s1 = inlined_call_operand.vmem [shape: f32[128,128], index: 1, kind: input, shape index: {}]
  %s2 = inlined_call_operand.vmem [shape: f32[128,128], index: 2, kind: output, shape index: {0}]
  %s3 = inlined_call_operand.vmem [shape: f32[2,1,128], index: 3, kind: output, shape index: {1}]
  %s4 = inlined_call_operand.vmem [shape: f32[2,1,128], index: 4, kind: output, shape index: {2}]
  %5 = xla_tuple %s2, %s3, %s4
  %s6 = sld [smem:[#allocation0]]
  $region57: #{block2d_forward.9} parent=0
    _
  %s8 = ssub.s32 1, %s6
  %s9 = scalar_select 0, %s8, %s6
  loop: start=0, step=1, limit=4
  $region2: #{block2d_forward.9} parent=0 // loop_pre_header
    _
  $region3: #{block2d_forward.9} parent=0 // loop_header
    %s11 = sphi 0, %s15
    %p12 = scmp.ge.s32.totalorder %s11, 4
    %s21 = sphi 0, %s23
    %s24 = sphi 0, %s21
    %s25 = sphi 0, %s24
    %s41 = sphi 0, %s25
    %s45 = sphi 0, %s45
    %s47 = sphi 0, %s45
    %s48 = sphi 0, %s47
    %s62 = sphi 0, %s48
    %s68 = sphi 0, %s70
    %s71 = sphi 0, %s68
    %s72 = sphi 0, %s71
    %s88 = sphi 0, %s72
    %s94 = sphi 0, %s96
    %s97 = sphi 0, %s94
    %s98 = sphi 0, %s97
    %s114 = sphi 0, %s98
    %s120 = sphi 0, %s122
    %s123 = sphi 0, %s120
    %s124 = sphi 0, %s123
    %s140 = sphi 0, %s124
  $region4: #{block2d_forward.9} parent=0 // loop_header_branch
    %14 = sbr.rel (%p12) target = $region8
  $region5: #{block2d_forward.9} parent=0 // loop_body
    %s16 = ssub.s32 %s11, 1
    %s17 = ssub.s32 %s11, 2
    %s18 = sadd.s32 %s11, 1
    %s19 = ssub.s32 %s11, %s18
    %p20 = scmp.eq.s32.totalorder %s19, 0
    %s22 = sadd.s32 %s21, 1
    %s23 = scalar_select %p20, %s21, %s22
    %p26 = pneg %p20
    %p27 = scmp.eq.s32.totalorder %s11, 1
    %p28 = por %p26, %p27
    %p29 = scmp.ne.s32.totalorder %s21, %s24
    %p30 = scmp.eq.s32.totalorder %s11, 0
    %p31 = por %p29, %p30
    %p32 = scmp.ne.s32.totalorder %s21, %s24
    %p33 = scmp.eq.s32.totalorder %s16, 1
    %p34 = por %p32, %p33
    %p35 = scmp.ne.s32.totalorder %s24, %s25
    %p36 = scmp.eq.s32.totalorder %s16, 0
    %p37 = por %p35, %p36
    %p38 = scmp.ne.s32.totalorder %s24, %s25
    %p39 = scmp.eq.s32.totalorder %s17, 1
    %p40 = por %p38, %p39
    %p42 = scmp.ne.s32.totalorder %s25, %s41
    %p43 = scmp.eq.s32.totalorder %s17, 0
    %p44 = por %p42, %p43
    %s46 = sadd.s32 %s45, 1
    %p49 = scmp.eq.s32.totalorder %s11, 1
    %p50 = scmp.ne.s32.totalorder %s45, %s47
    %p51 = scmp.eq.s32.totalorder %s11, 0
    %p52 = por %p50, %p51
    %p53 = scmp.ne.s32.totalorder %s45, %s47
    %p54 = scmp.eq.s32.totalorder %s16, 1
    %p55 = por %p53, %p54
    %p56 = scmp.ne.s32.totalorder %s47, %s48
    %p57 = scmp.eq.s32.totalorder %s16, 0
    %p58 = por %p56, %p57
    %p59 = scmp.ne.s32.totalorder %s47, %s48
    %p60 = scmp.eq.s32.totalorder %s17, 1
    %p61 = por %p59, %p60
    %p63 = scmp.ne.s32.totalorder %s48, %s62
    %p64 = scmp.eq.s32.totalorder %s17, 0
    %p65 = por %p63, %p64
    %s66 = ssub.s32 %s11, %s18
    %p67 = scmp.eq.s32.totalorder %s66, 0
    %s69 = sadd.s32 %s68, 1
    %s70 = scalar_select %p67, %s68, %s69
    %p73 = pneg %p67
    %p74 = scmp.eq.s32.totalorder %s11, 1
    %p75 = por %p73, %p74
    %p76 = scmp.ne.s32.totalorder %s68, %s71
    %p77 = scmp.eq.s32.totalorder %s11, 0
    %p78 = por %p76, %p77
    %p79 = scmp.ne.s32.totalorder %s68, %s71
    %p80 = scmp.eq.s32.totalorder %s16, 1
    %p81 = por %p79, %p80
    %p82 = scmp.ne.s32.totalorder %s71, %s72
    %p83 = scmp.eq.s32.totalorder %s16, 0
    %p84 = por %p82, %p83
    %p85 = scmp.ne.s32.totalorder %s71, %s72
    %p86 = scmp.eq.s32.totalorder %s17, 1
    %p87 = por %p85, %p86
    %p89 = scmp.ne.s32.totalorder %s72, %s88
    %p90 = scmp.eq.s32.totalorder %s17, 0
    %p91 = por %p89, %p90
    %s92 = ssub.s32 %s11, %s18
    %p93 = scmp.eq.s32.totalorder %s92, 0
    %s95 = sadd.s32 %s94, 1
    %s96 = scalar_select %p93, %s94, %s95
    %p99 = pneg %p93
    %p100 = scmp.eq.s32.totalorder %s11, 1
    %p101 = por %p99, %p100
    %p102 = scmp.ne.s32.totalorder %s94, %s97
    %p103 = scmp.eq.s32.totalorder %s11, 0
    %p104 = por %p102, %p103
    %p105 = scmp.ne.s32.totalorder %s94, %s97
    %p106 = scmp.eq.s32.totalorder %s16, 1
    %p107 = por %p105, %p106
    %p108 = scmp.ne.s32.totalorder %s97, %s98
    %p109 = scmp.eq.s32.totalorder %s16, 0
    %p110 = por %p108, %p109
    %p111 = scmp.ne.s32.totalorder %s97, %s98
    %p112 = scmp.eq.s32.totalorder %s17, 1
    %p113 = por %p111, %p112
    %p115 = scmp.ne.s32.totalorder %s98, %s114
    %p116 = scmp.eq.s32.totalorder %s17, 0
    %p117 = por %p115, %p116
    %s118 = ssub.s32 %s11, %s18
    %p119 = scmp.eq.s32.totalorder %s118, 0
    %s121 = sadd.s32 %s120, 1
    %s122 = scalar_select %p119, %s120, %s121
    %p125 = pneg %p119
    %p126 = scmp.eq.s32.totalorder %s11, 1
    %p127 = por %p125, %p126
    %p128 = scmp.ne.s32.totalorder %s120, %s123
    %p129 = scmp.eq.s32.totalorder %s11, 0
    %p130 = por %p128, %p129
    %p131 = scmp.ne.s32.totalorder %s120, %s123
    %p132 = scmp.eq.s32.totalorder %s16, 1
    %p133 = por %p131, %p132
    %p134 = scmp.ne.s32.totalorder %s123, %s124
    %p135 = scmp.eq.s32.totalorder %s16, 0
    %p136 = por %p134, %p135
    %p137 = scmp.ne.s32.totalorder %s123, %s124
    %p138 = scmp.eq.s32.totalorder %s17, 1
    %p139 = por %p137, %p138
    %p141 = scmp.ne.s32.totalorder %s124, %s140
    %p142 = scmp.eq.s32.totalorder %s17, 0
    %p143 = por %p141, %p142
    %p144 = scmp.le.s32.totalorder 1, %s11
    %p145 = scmp.lt.s32.totalorder %s11, 3
    %p146 = pnand %p144, %p145
    %p147 = pneg %p146
    // Predicated region
    $region9: #{block2d_forward.9} parent=5 // pred_check
      _
    $region10: #{block2d_forward.9} parent=5 // pred_check_branch
      %149 = sbr.rel (%p146) target = $region12
    $region11: #{block2d_forward.9} parent=5 // pred_region
      %s150 = ssub.s32 %s11, 1
      // Predicated region
      $region13: #{block2d_forward.9} parent=11 // pred_check
        %p151 = pneg %p58
      $region14: #{block2d_forward.9} parent=11 // pred_check_branch
        %153 = sbr.rel (%p151) target = $region16
      $region15: #{block2d_forward.9} parent=11 // pred_region
        _
      $region16: #{block2d_forward.9} parent=11 // pred_fallthru
        _
    $region12: #{block2d_forward.9} parent=5 // pred_fallthru
      _
    %p154 = scmp.lt.s32.totalorder %s11, 2
    // Predicated region
    $region17: #{block2d_forward.9} parent=5 // pred_check
      %p155 = pneg %p154
    $region18: #{block2d_forward.9} parent=5 // pred_check_branch
      %157 = sbr.rel (%p155) target = $region20
    $region19: #{block2d_forward.9} parent=5 // pred_region
      // Predicated region
      $region21: #{block2d_forward.9} parent=19 // pred_check
        %p158 = pneg %p31
      $region22: #{block2d_forward.9} parent=19 // pred_check_branch
        %160 = sbr.rel (%p158) target = $region24
      $region23: #{block2d_forward.9} parent=19 // pred_region
        %s161 = smul.u32 8, %s11
        %p162 = scmp.lt.s32.totalorder %s161, 15
        %s163 = scalar_select %p162, %s161, 15
        %s164 = smul.addr %s163, 8
        %s165 = scalar_lea.vmem %s0, %s164
        %s166 = smul.u32 8, %s11
      $region24: #{block2d_forward.9} parent=19 // pred_fallthru
        _
    $region20: #{block2d_forward.9} parent=5 // pred_fallthru
      _
    %p167 = scmp.le.s32.totalorder 1, %s11
    %p168 = scmp.lt.s32.totalorder %s11, 3
    %p169 = pnand %p167, %p168
    %p170 = pneg %p169
    // Predicated region
    $region25: #{block2d_forward.9} parent=5 // pred_check
      _
    $region26: #{block2d_forward.9} parent=5 // pred_check_branch
      %172 = sbr.rel (%p169) target = $region28
    $region27: #{block2d_forward.9} parent=5 // pred_region
      %s173 = ssub.s32 %s11, 1
      %s174 = smul.u32 8, %s16
      %p175 = scmp.lt.s32.totalorder %s174, 15
      %s176 = scalar_select %p175, %s174, 15
      %s177 = smul.addr %s176, 8
      %s178 = scalar_lea.vmem %s0, %s177
      %p179 = pneg %p37
      %p180 = pneg %p34
      %p181 = pneg %p58
      %p182 = pneg %p55
      %p183 = pneg %p84
      %p184 = pneg %p81
      %s185 = smul.u32 8, %s16
      %p186 = scmp.lt.s32.totalorder %s185, 15
      %s187 = scalar_select %p186, %s185, 15
      %s188 = smul.addr %s187, 8
      %s189 = scalar_lea.vmem %s2, %s188
      %p190 = pneg %p110
      %p191 = pneg %p107
      %p192 = scmp.lt.s32.totalorder %s16, 1
      %s193 = scalar_select %p192, %s16, 1
      %s194 = scalar_lea.vmem %s3, %s193
      %p195 = pneg %p136
      %p196 = pneg %p133
      %p197 = scmp.lt.s32.totalorder %s16, 1
      %s198 = scalar_select %p197, %s16, 1
      %s199 = scalar_lea.vmem %s4, %s198
      %s200 = smul.u32 8, %s16
      %p201 = scmp.lt.s32.totalorder %s200, 15
      %s202 = scalar_select %p201, %s200, 15
      %s203 = smul.addr %s202, 8
      %s204 = scalar_lea.vmem %s0, %s203
      %s205 = smul.u32 8, %s16
      %s206 = smul.u32 8, %s16
      %p207 = scmp.lt.s32.totalorder %s206, 15
      %s208 = scalar_select %p207, %s206, 15
      %s209 = smul.addr %s208, 8
      %s210 = scalar_lea.vmem %s2, %s209
      %s211 = smul.u32 8, %s16
      %p212 = scmp.lt.s32.totalorder %s16, 1
      %s213 = scalar_select %p212, %s16, 1
      %s214 = scalar_lea.vmem %s3, %s213
      %p215 = scmp.lt.s32.totalorder %s16, 1
      %s216 = scalar_select %p215, %s16, 1
      %s217 = scalar_lea.vmem %s4, %s216
      %v218 = vld [vmem:[%s204] sm:$0xff]
      %v219 = vld [vmem:[%s204 + $0x8] sm:$0xff]
      %v220 = vld [vmem:[%s204 + $0x10] sm:$0xff]
      %v221 = vld [vmem:[%s204 + $0x18] sm:$0xff]
      %v222 = vld [vmem:[%s204 + $0x20] sm:$0xff]
      %v223 = vld [vmem:[%s204 + $0x28] sm:$0xff]
      %v224 = vld [vmem:[%s204 + $0x30] sm:$0xff]
      %v225 = vld [vmem:[%s204 + $0x38] sm:$0xff]
      %v226 = vld [vmem:[%s1] sm:$0xff]
      %v227 = vld [vmem:[%s1 + $0x8] sm:$0xff]
      %v228 = vld [vmem:[%s1 + $0x10] sm:$0xff]
      %v229 = vld [vmem:[%s1 + $0x18] sm:$0xff]
      %v230 = vld [vmem:[%s1 + $0x20] sm:$0xff]
      %v231 = vld [vmem:[%s1 + $0x28] sm:$0xff]
      %v232 = vld [vmem:[%s1 + $0x30] sm:$0xff]
      %v233 = vld [vmem:[%s1 + $0x38] sm:$0xff]
      %v234 = vld [vmem:[%s1 + $0x40] sm:$0xff]
      %v235 = vld [vmem:[%s1 + $0x48] sm:$0xff]
      %v236 = vld [vmem:[%s1 + $0x50] sm:$0xff]
      %v237 = vld [vmem:[%s1 + $0x58] sm:$0xff]
      %v238 = vld [vmem:[%s1 + $0x60] sm:$0xff]
      %v239 = vld [vmem:[%s1 + $0x68] sm:$0xff]
      %v240 = vld [vmem:[%s1 + $0x70] sm:$0xff]
      %v241 = vld [vmem:[%s1 + $0x78] sm:$0xff]
      %242 = vmatprep.subr.mxu0 0.0
      %243 = vmatpush1.msra.mxu0 %v226
      %244 = vmatprep.subr.mxu0 0.0
      %245 = vmatpush1.msra.mxu0 %v227
      %246 = vmatprep.subr.mxu0 0.0
      %247 = vmatpush1.msra.mxu0 %v228
      %248 = vmatprep.subr.mxu0 0.0
      %249 = vmatpush1.msra.mxu0 %v229
      %250 = vmatprep.subr.mxu0 0.0
      %251 = vmatpush1.msra.mxu0 %v230
      %252 = vmatprep.subr.mxu0 0.0
      %253 = vmatpush1.msra.mxu0 %v231
      %254 = vmatprep.subr.mxu0 0.0
      %255 = vmatpush1.msra.mxu0 %v232
      %256 = vmatprep.subr.mxu0 0.0
      %257 = vmatpush1.msra.mxu0 %v233
      %258 = vmatprep.subr.mxu0 0.0
      %259 = vmatpush1.msra.mxu0 %v234
      %260 = vmatprep.subr.mxu0 0.0
      %261 = vmatpush1.msra.mxu0 %v235
      %262 = vmatprep.subr.mxu0 0.0
      %263 = vmatpush1.msra.mxu0 %v236
      %264 = vmatprep.subr.mxu0 0.0
      %265 = vmatpush1.msra.mxu0 %v237
      %266 = vmatprep.subr.mxu0 0.0
      %267 = vmatpush1.msra.mxu0 %v238
      %268 = vmatprep.subr.mxu0 0.0
      %269 = vmatpush1.msra.mxu0 %v239
      %270 = vmatprep.subr.mxu0 0.0
      %271 = vmatpush1.msra.mxu0 %v240
      %272 = vmatprep.subr.mxu0 0.0
      %273 = vmatpush1.msra.mxu0 %v241
      %274 = vmatprep.subr.mxu0 0.0
      %275 = vmatpush1.msra.mxu0 0.0
      %276 = vmatprep.subr.mxu0 0.0
      %277 = vmatpush1.msra.mxu0 0.0
      %278 = vmatprep.subr.mxu0 0.0
      %279 = vmatpush1.msra.mxu0 0.0
      %280 = vmatprep.subr.mxu0 0.0
      %281 = vmatpush1.msra.mxu0 0.0
      %282 = vmatprep.subr.mxu0 0.0
      %283 = vmatpush1.msra.mxu0 0.0
      %284 = vmatprep.subr.mxu0 0.0
      %285 = vmatpush1.msra.mxu0 0.0
      %286 = vmatprep.subr.mxu0 0.0
      %287 = vmatpush1.msra.mxu0 0.0
      %288 = vmatprep.subr.mxu0 0.0
      %289 = vmatpush1.msra.mxu0 0.0
      %290 = vmatprep.subr.mxu0 0.0
      %291 = vmatpush1.msra.mxu0 0.0
      %292 = vmatprep.subr.mxu0 0.0
      %293 = vmatpush1.msra.mxu0 0.0
      %294 = vmatprep.subr.mxu0 0.0
      %295 = vmatpush1.msra.mxu0 0.0
      %296 = vmatprep.subr.mxu0 0.0
      %297 = vmatpush1.msra.mxu0 0.0
      %298 = vmatprep.subr.mxu0 0.0
      %299 = vmatpush1.msra.mxu0 0.0
      %300 = vmatprep.subr.mxu0 0.0
      %301 = vmatpush1.msra.mxu0 0.0
      %302 = vmatprep.subr.mxu0 0.0
      %303 = vmatpush1.msra.mxu0 0.0
      %304 = vmatprep.subr.mxu0 0.0
      %305 = vmatpush1.msra.mxu0 0.0
      %306 = vmatprep.mubr.f32.mxu0 0.0
      %307 = vmatmul.mubr.f32.gmra.mrb[0].mxu0 %v218
      %v308 = vpop.f32.mrb[0].mxu0
      %v309 = vadd.f32 0.0, %v308
      %v310 = vpop.f32.mrb[0].mxu0
      %311 = vmatprep.mubr.f32.mxu0 0.0
      %312 = vmatmul.mubr.f32.gmra.mrb[0].mxu0 %v219
      %v313 = vpop.f32.mrb[0].mxu0
      %v314 = vadd.f32 0.0, %v313
      %v315 = vpop.f32.mrb[0].mxu0
      %316 = vmatprep.mubr.f32.mxu0 0.0
      %317 = vmatmul.mubr.f32.gmra.mrb[0].mxu0 %v220
      %v318 = vpop.f32.mrb[0].mxu0
      %v319 = vadd.f32 0.0, %v318
      %v320 = vpop.f32.mrb[0].mxu0
      %321 = vmatprep.mubr.f32.mxu0 0.0
      %322 = vmatmul.mubr.f32.gmra.mrb[0].mxu0 %v221
      %v323 = vpop.f32.mrb[0].mxu0
      %v324 = vadd.f32 0.0, %v323
      %v325 = vpop.f32.mrb[0].mxu0
      %326 = vmatprep.mubr.f32.mxu0 0.0
      %327 = vmatmul.mubr.f32.gmra.mrb[0].mxu0 %v222
      %v328 = vpop.f32.mrb[0].mxu0
      %v329 = vadd.f32 0.0, %v328
      %v330 = vpop.f32.mrb[0].mxu0
      %331 = vmatprep.mubr.f32.mxu0 0.0
      %332 = vmatmul.mubr.f32.gmra.mrb[0].mxu0 %v223
      %v333 = vpop.f32.mrb[0].mxu0
      %v334 = vadd.f32 0.0, %v333
      %v335 = vpop.f32.mrb[0].mxu0
      %336 = vmatprep.mubr.f32.mxu0 0.0
      %337 = vmatmul.mubr.f32.gmra.mrb[0].mxu0 %v224
      %v338 = vpop.f32.mrb[0].mxu0
      %v339 = vadd.f32 0.0, %v338
      %v340 = vpop.f32.mrb[0].mxu0
      %341 = vmatprep.mubr.f32.mxu0 0.0
      %342 = vmatmul.mubr.f32.gmra.mrb[0].mxu0 %v225
      %v343 = vpop.f32.mrb[0].mxu0
      %v344 = vadd.f32 0.0, %v343
      %v345 = vpop.f32.mrb[0].mxu0
      %346 = vdwg.mxu0
      %347 = vst [vmem:[%s210] sm:$0xff] %v309
      %348 = vst [vmem:[%s210 + $0x8] sm:$0xff] %v314
      %349 = vst [vmem:[%s210 + $0x10] sm:$0xff] %v319
      %350 = vst [vmem:[%s210 + $0x18] sm:$0xff] %v324
      %351 = vst [vmem:[%s210 + $0x20] sm:$0xff] %v329
      %352 = vst [vmem:[%s210 + $0x28] sm:$0xff] %v334
      %353 = vst [vmem:[%s210 + $0x30] sm:$0xff] %v339
      %354 = vst [vmem:[%s210 + $0x38] sm:$0xff] %v344
      %v355 = vadd.f32 %v309, %v314
      %v356 = vadd.f32 %v355, %v319
      %v357 = vadd.f32 %v356, %v324
      %v358 = vadd.f32 %v357, %v329
      %v359 = vadd.f32 %v358, %v334
      %v360 = vadd.f32 %v359, %v339
      %v361 = vadd.f32 %v360, %v344
      %v362 = vrot.slane %v361, 4
      %v363 = vadd.f32 %v361, %v362
      %v364 = vrot.slane %v363, 2
      %v365 = vadd.f32 %v363, %v364
      %v366 = vrot.slane %v365, 1
      %v367 = vadd.f32 %v365, %v366
      %v368 = vmul.f32 %v309, %v309
      %v369 = vmul.f32 %v314, %v314
      %v370 = vmul.f32 %v319, %v319
      %v371 = vmul.f32 %v324, %v324
      %v372 = vmul.f32 %v329, %v329
      %v373 = vmul.f32 %v334, %v334
      %v374 = vmul.f32 %v339, %v339
      %v375 = vmul.f32 %v344, %v344
      %v376 = vadd.f32 %v368, %v369
      %v377 = vadd.f32 %v376, %v370
      %v378 = vadd.f32 %v377, %v371
      %v379 = vadd.f32 %v378, %v372
      %v380 = vadd.f32 %v379, %v373
      %v381 = vadd.f32 %v380, %v374
      %v382 = vadd.f32 %v381, %v375
      %v383 = vrot.slane %v382, 4
      %v384 = vadd.f32 %v382, %v383
      %v385 = vrot.slane %v384, 2
      %v386 = vadd.f32 %v384, %v385
      %v387 = vrot.slane %v386, 1
      %v388 = vadd.f32 %v386, %v387
      %389 = vst [vmem:[%s214] sm:$0x1] %v367
      %390 = vst [vmem:[%s217] sm:$0x1] %v388
      %s391 = smul.u32 8, %s16
      %p392 = scmp.lt.s32.totalorder %s391, 15
      %s393 = scalar_select %p392, %s391, 15
      %s394 = smul.addr %s393, 8
      %s395 = scalar_lea.vmem %s2, %s394
      %p396 = scmp.lt.s32.totalorder %s16, 1
      %s397 = scalar_select %p396, %s16, 1
      %s398 = scalar_lea.vmem %s3, %s397
      %p399 = scmp.lt.s32.totalorder %s16, 1
      %s400 = scalar_select %p399, %s16, 1
      %s401 = scalar_lea.vmem %s4, %s400
      // Predicated region
      $region29: #{block2d_forward.9} parent=27 // pred_check
        %p402 = pneg %p81
      $region30: #{block2d_forward.9} parent=27 // pred_check_branch
        %404 = sbr.rel (%p402) target = $region32
      $region31: #{block2d_forward.9} parent=27 // pred_region
        %s405 = smul.u32 8, %s16
      $region32: #{block2d_forward.9} parent=27 // pred_fallthru
        _
      // Predicated region
      $region33: #{block2d_forward.9} parent=27 // pred_check
        %p406 = pneg %p107
      $region34: #{block2d_forward.9} parent=27 // pred_check_branch
        %408 = sbr.rel (%p406) target = $region36
      $region35: #{block2d_forward.9} parent=27 // pred_region
        _
      $region36: #{block2d_forward.9} parent=27 // pred_fallthru
        _
      // Predicated region
      $region37: #{block2d_forward.9} parent=27 // pred_check
        %p409 = pneg %p133
      $region38: #{block2d_forward.9} parent=27 // pred_check_branch
        %411 = sbr.rel (%p409) target = $region40
      $region39: #{block2d_forward.9} parent=27 // pred_region
        _
      $region40: #{block2d_forward.9} parent=27 // pred_fallthru
        _
    $region28: #{block2d_forward.9} parent=5 // pred_fallthru
      _
    %p412 = scmp.le.s32.totalorder 2, %s11
    // Predicated region
    $region41: #{block2d_forward.9} parent=5 // pred_check
      %p413 = pneg %p412
    $region42: #{block2d_forward.9} parent=5 // pred_check_branch
      %415 = sbr.rel (%p413) target = $region44
    $region43: #{block2d_forward.9} parent=5 // pred_region
      %s416 = ssub.s32 %s11, 2
      // Predicated region
      $region45: #{block2d_forward.9} parent=43 // pred_check
        %p417 = pneg %p87
      $region46: #{block2d_forward.9} parent=43 // pred_check_branch
        %419 = sbr.rel (%p417) target = $region48
      $region47: #{block2d_forward.9} parent=43 // pred_region
        %s420 = smul.u32 8, %s17
        %p421 = scmp.lt.s32.totalorder %s420, 15
        %s422 = scalar_select %p421, %s420, 15
        %s423 = smul.addr %s422, 8
        %s424 = scalar_lea.vmem %s2, %s423
      $region48: #{block2d_forward.9} parent=43 // pred_fallthru
        _
      // Predicated region
      $region49: #{block2d_forward.9} parent=43 // pred_check
        %p425 = pneg %p113
      $region50: #{block2d_forward.9} parent=43 // pred_check_branch
        %427 = sbr.rel (%p425) target = $region52
      $region51: #{block2d_forward.9} parent=43 // pred_region
        %p428 = scmp.lt.s32.totalorder %s17, 1
        %s429 = scalar_select %p428, %s17, 1
        %s430 = scalar_lea.vmem %s3, %s429
      $region52: #{block2d_forward.9} parent=43 // pred_fallthru
        _
      // Predicated region
      $region53: #{block2d_forward.9} parent=43 // pred_check
        %p431 = pneg %p139
      $region54: #{block2d_forward.9} parent=43 // pred_check_branch
        %433 = sbr.rel (%p431) target = $region56
      $region55: #{block2d_forward.9} parent=43 // pred_region
        %p434 = scmp.lt.s32.totalorder %s17, 1
        %s435 = scalar_select %p434, %s17, 1
        %s436 = scalar_lea.vmem %s4, %s435
      $region56: #{block2d_forward.9} parent=43 // pred_fallthru
        _
    $region44: #{block2d_forward.9} parent=5 // pred_fallthru
      _
  $region6: #{block2d_forward.9} parent=0 // loop_footer
    %s15 = sadd.s32 1, %s11
  $region7: #{block2d_forward.9} parent=0 // loop_footer_branch
    %10 = sbr.rel target = $region3
  $region8: #{block2d_forward.9} parent=0 // loop_exit
    _

// kernel: block2d_forward.13
$region0: #{block2d_forward.13}
  #allocation0 [shape = 'u32[]', space=smem, size = 0x4, offset = 0x4, fixed_abs, tag = 'smem constant byte address 0x4 - core index']
  #allocation1 [shape = 'u32[144,128]{1,0:T(1,128)}', space=vmem, size = 0x12000, scoped, tag = 'internal scratch']
  %s0 = inlined_call_operand.vmem [shape: f32[128,128], index: 0, kind: input, shape index: {}]
  %s1 = inlined_call_operand.vmem [shape: f32[128,128], index: 1, kind: input, shape index: {}]
  %s2 = inlined_call_operand.vmem [shape: f32[1,128], index: 2, kind: input, shape index: {}]
  %s3 = inlined_call_operand.vmem [shape: f32[1,128], index: 3, kind: input, shape index: {}]
  %s4 = inlined_call_operand.vmem [shape: f32[1,128], index: 4, kind: input, shape index: {}]
  %s5 = inlined_call_operand.vmem [shape: f32[128,128], index: 5, kind: output, shape index: {}]
  %s6 = sld [smem:[#allocation0]]
  $region53: #{block2d_forward.13} parent=0
    _
  %s8 = ssub.s32 1, %s6
  %s9 = scalar_select 0, %s8, %s6
  loop: start=0, step=1, limit=4
  $region2: #{block2d_forward.13} parent=0 // loop_pre_header
    _
  $region3: #{block2d_forward.13} parent=0 // loop_header
    %s11 = sphi 0, %s15
    %p12 = scmp.ge.s32.totalorder %s11, 4
    %s21 = sphi 0, %s23
    %s24 = sphi 0, %s21
    %s25 = sphi 0, %s24
    %s41 = sphi 0, %s25
    %s47 = sphi 0, %s49
    %s50 = sphi 0, %s47
    %s51 = sphi 0, %s50
    %s67 = sphi 0, %s51
    %s71 = sphi 0, %s71
    %s73 = sphi 0, %s71
    %s74 = sphi 0, %s73
    %s88 = sphi 0, %s74
    %s92 = sphi 0, %s92
    %s94 = sphi 0, %s92
    %s95 = sphi 0, %s94
    %s109 = sphi 0, %s95
    %s113 = sphi 0, %s113
    %s115 = sphi 0, %s113
    %s116 = sphi 0, %s115
    %s130 = sphi 0, %s116
    %s136 = sphi 0, %s138
    %s139 = sphi 0, %s136
    %s140 = sphi 0, %s139
    %s156 = sphi 0, %s140
  $region4: #{block2d_forward.13} parent=0 // loop_header_branch
    %14 = sbr.rel (%p12) target = $region8
  $region5: #{block2d_forward.13} parent=0 // loop_body
    %s16 = ssub.s32 %s11, 1
    %s17 = ssub.s32 %s11, 2
    %s18 = sadd.s32 %s11, 1
    %s19 = ssub.s32 %s11, %s18
    %p20 = scmp.eq.s32.totalorder %s19, 0
    %s22 = sadd.s32 %s21, 1
    %s23 = scalar_select %p20, %s21, %s22
    %p26 = pneg %p20
    %p27 = scmp.eq.s32.totalorder %s11, 1
    %p28 = por %p26, %p27
    %p29 = scmp.ne.s32.totalorder %s21, %s24
    %p30 = scmp.eq.s32.totalorder %s11, 0
    %p31 = por %p29, %p30
    %p32 = scmp.ne.s32.totalorder %s21, %s24
    %p33 = scmp.eq.s32.totalorder %s16, 1
    %p34 = por %p32, %p33
    %p35 = scmp.ne.s32.totalorder %s24, %s25
    %p36 = scmp.eq.s32.totalorder %s16, 0
    %p37 = por %p35, %p36
    %p38 = scmp.ne.s32.totalorder %s24, %s25
    %p39 = scmp.eq.s32.totalorder %s17, 1
    %p40 = por %p38, %p39
    %p42 = scmp.ne.s32.totalorder %s25, %s41
    %p43 = scmp.eq.s32.totalorder %s17, 0
    %p44 = por %p42, %p43
    %s45 = ssub.s32 %s11, %s18
    %p46 = scmp.eq.s32.totalorder %s45, 0
    %s48 = sadd.s32 %s47, 1
    %s49 = scalar_select %p46, %s47, %s48
    %p52 = pneg %p46
    %p53 = scmp.eq.s32.totalorder %s11, 1
    %p54 = por %p52, %p53
    %p55 = scmp.ne.s32.totalorder %s47, %s50
    %p56 = scmp.eq.s32.totalorder %s11, 0
    %p57 = por %p55, %p56
    %p58 = scmp.ne.s32.totalorder %s47, %s50
    %p59 = scmp.eq.s32.totalorder %s16, 1
    %p60 = por %p58, %p59
    %p61 = scmp.ne.s32.totalorder %s50, %s51
    %p62 = scmp.eq.s32.totalorder %s16, 0
    %p63 = por %p61, %p62
    %p64 = scmp.ne.s32.totalorder %s50, %s51
    %p65 = scmp.eq.s32.totalorder %s17, 1
    %p66 = por %p64, %p65
    %p68 = scmp.ne.s32.totalorder %s51, %s67
    %p69 = scmp.eq.s32.totalorder %s17, 0
    %p70 = por %p68, %p69
    %s72 = sadd.s32 %s71, 1
    %p75 = scmp.eq.s32.totalorder %s11, 1
    %p76 = scmp.ne.s32.totalorder %s71, %s73
    %p77 = scmp.eq.s32.totalorder %s11, 0
    %p78 = por %p76, %p77
    %p79 = scmp.ne.s32.totalorder %s71, %s73
    %p80 = scmp.eq.s32.totalorder %s16, 1
    %p81 = por %p79, %p80
    %p82 = scmp.ne.s32.totalorder %s73, %s74
    %p83 = scmp.eq.s32.totalorder %s16, 0
    %p84 = por %p82, %p83
    %p85 = scmp.ne.s32.totalorder %s73, %s74
    %p86 = scmp.eq.s32.totalorder %s17, 1
    %p87 = por %p85, %p86
    %p89 = scmp.ne.s32.totalorder %s74, %s88
    %p90 = scmp.eq.s32.totalorder %s17, 0
    %p91 = por %p89, %p90
    %s93 = sadd.s32 %s92, 1
    %p96 = scmp.eq.s32.totalorder %s11, 1
    %p97 = scmp.ne.s32.totalorder %s92, %s94
    %p98 = scmp.eq.s32.totalorder %s11, 0
    %p99 = por %p97, %p98
    %p100 = scmp.ne.s32.totalorder %s92, %s94
    %p101 = scmp.eq.s32.totalorder %s16, 1
    %p102 = por %p100, %p101
    %p103 = scmp.ne.s32.totalorder %s94, %s95
    %p104 = scmp.eq.s32.totalorder %s16, 0
    %p105 = por %p103, %p104
    %p106 = scmp.ne.s32.totalorder %s94, %s95
    %p107 = scmp.eq.s32.totalorder %s17, 1
    %p108 = por %p106, %p107
    %p110 = scmp.ne.s32.totalorder %s95, %s109
    %p111 = scmp.eq.s32.totalorder %s17, 0
    %p112 = por %p110, %p111
    %s114 = sadd.s32 %s113, 1
    %p117 = scmp.eq.s32.totalorder %s11, 1
    %p118 = scmp.ne.s32.totalorder %s113, %s115
    %p119 = scmp.eq.s32.totalorder %s11, 0
    %p120 = por %p118, %p119
    %p121 = scmp.ne.s32.totalorder %s113, %s115
    %p122 = scmp.eq.s32.totalorder %s16, 1
    %p123 = por %p121, %p122
    %p124 = scmp.ne.s32.totalorder %s115, %s116
    %p125 = scmp.eq.s32.totalorder %s16, 0
    %p126 = por %p124, %p125
    %p127 = scmp.ne.s32.totalorder %s115, %s116
    %p128 = scmp.eq.s32.totalorder %s17, 1
    %p129 = por %p127, %p128
    %p131 = scmp.ne.s32.totalorder %s116, %s130
    %p132 = scmp.eq.s32.totalorder %s17, 0
    %p133 = por %p131, %p132
    %s134 = ssub.s32 %s11, %s18
    %p135 = scmp.eq.s32.totalorder %s134, 0
    %s137 = sadd.s32 %s136, 1
    %s138 = scalar_select %p135, %s136, %s137
    %p141 = pneg %p135
    %p142 = scmp.eq.s32.totalorder %s11, 1
    %p143 = por %p141, %p142
    %p144 = scmp.ne.s32.totalorder %s136, %s139
    %p145 = scmp.eq.s32.totalorder %s11, 0
    %p146 = por %p144, %p145
    %p147 = scmp.ne.s32.totalorder %s136, %s139
    %p148 = scmp.eq.s32.totalorder %s16, 1
    %p149 = por %p147, %p148
    %p150 = scmp.ne.s32.totalorder %s139, %s140
    %p151 = scmp.eq.s32.totalorder %s16, 0
    %p152 = por %p150, %p151
    %p153 = scmp.ne.s32.totalorder %s139, %s140
    %p154 = scmp.eq.s32.totalorder %s17, 1
    %p155 = por %p153, %p154
    %p157 = scmp.ne.s32.totalorder %s140, %s156
    %p158 = scmp.eq.s32.totalorder %s17, 0
    %p159 = por %p157, %p158
    %p160 = scmp.le.s32.totalorder 1, %s11
    %p161 = scmp.lt.s32.totalorder %s11, 3
    %p162 = pnand %p160, %p161
    %p163 = pneg %p162
    // Predicated region
    $region9: #{block2d_forward.13} parent=5 // pred_check
      _
    $region10: #{block2d_forward.13} parent=5 // pred_check_branch
      %165 = sbr.rel (%p162) target = $region12
    $region11: #{block2d_forward.13} parent=5 // pred_region
      %s166 = ssub.s32 %s11, 1
      // Predicated region
      $region13: #{block2d_forward.13} parent=11 // pred_check
        %p167 = pneg %p84
      $region14: #{block2d_forward.13} parent=11 // pred_check_branch
        %169 = sbr.rel (%p167) target = $region16
      $region15: #{block2d_forward.13} parent=11 // pred_region
        _
      $region16: #{block2d_forward.13} parent=11 // pred_fallthru
        _
      // Predicated region
      $region17: #{block2d_forward.13} parent=11 // pred_check
        %p170 = pneg %p105
      $region18: #{block2d_forward.13} parent=11 // pred_check_branch
        %172 = sbr.rel (%p170) target = $region20
      $region19: #{block2d_forward.13} parent=11 // pred_region
        _
      $region20: #{block2d_forward.13} parent=11 // pred_fallthru
        _
      // Predicated region
      $region21: #{block2d_forward.13} parent=11 // pred_check
        %p173 = pneg %p126
      $region22: #{block2d_forward.13} parent=11 // pred_check_branch
        %175 = sbr.rel (%p173) target = $region24
      $region23: #{block2d_forward.13} parent=11 // pred_region
        _
      $region24: #{block2d_forward.13} parent=11 // pred_fallthru
        _
    $region12: #{block2d_forward.13} parent=5 // pred_fallthru
      _
    %p176 = scmp.lt.s32.totalorder %s11, 2
    // Predicated region
    $region25: #{block2d_forward.13} parent=5 // pred_check
      %p177 = pneg %p176
    $region26: #{block2d_forward.13} parent=5 // pred_check_branch
      %179 = sbr.rel (%p177) target = $region28
    $region27: #{block2d_forward.13} parent=5 // pred_region
      // Predicated region
      $region29: #{block2d_forward.13} parent=27 // pred_check
        %p180 = pneg %p31
      $region30: #{block2d_forward.13} parent=27 // pred_check_branch
        %182 = sbr.rel (%p180) target = $region32
      $region31: #{block2d_forward.13} parent=27 // pred_region
        %s183 = smul.u32 8, %s11
        %p184 = scmp.lt.s32.totalorder %s183, 15
        %s185 = scalar_select %p184, %s183, 15
        %s186 = smul.addr %s185, 8
        %s187 = scalar_lea.vmem %s0, %s186
        %s188 = smul.u32 8, %s11
      $region32: #{block2d_forward.13} parent=27 // pred_fallthru
        _
      // Predicated region
      $region33: #{block2d_forward.13} parent=27 // pred_check
        %p189 = pneg %p57
      $region34: #{block2d_forward.13} parent=27 // pred_check_branch
        %191 = sbr.rel (%p189) target = $region36
      $region35: #{block2d_forward.13} parent=27 // pred_region
        %s192 = smul.u32 8, %s11
        %p193 = scmp.lt.s32.totalorder %s192, 15
        %s194 = scalar_select %p193, %s192, 15
        %s195 = smul.addr %s194, 8
        %s196 = scalar_lea.vmem %s1, %s195
        %s197 = smul.u32 8, %s11
      $region36: #{block2d_forward.13} parent=27 // pred_fallthru
        _
    $region28: #{block2d_forward.13} parent=5 // pred_fallthru
      _
    %p198 = scmp.le.s32.totalorder 1, %s11
    %p199 = scmp.lt.s32.totalorder %s11, 3
    %p200 = pnand %p198, %p199
    %p201 = pneg %p200
    // Predicated region
    $region37: #{block2d_forward.13} parent=5 // pred_check
      _
    $region38: #{block2d_forward.13} parent=5 // pred_check_branch
      %203 = sbr.rel (%p200) target = $region40
    $region39: #{block2d_forward.13} parent=5 // pred_region
      %s204 = ssub.s32 %s11, 1
      %s205 = smul.u32 8, %s16
      %p206 = scmp.lt.s32.totalorder %s205, 15
      %s207 = scalar_select %p206, %s205, 15
      %s208 = smul.addr %s207, 8
      %s209 = scalar_lea.vmem %s0, %s208
      %p210 = pneg %p37
      %p211 = pneg %p34
      %s212 = smul.u32 8, %s16
      %p213 = scmp.lt.s32.totalorder %s212, 15
      %s214 = scalar_select %p213, %s212, 15
      %s215 = smul.addr %s214, 8
      %s216 = scalar_lea.vmem %s1, %s215
      %p217 = pneg %p63
      %p218 = pneg %p60
      %p219 = pneg %p84
      %p220 = pneg %p81
      %p221 = pneg %p105
      %p222 = pneg %p102
      %p223 = pneg %p126
      %p224 = pneg %p123
      %p225 = pneg %p152
      %p226 = pneg %p149
      %s227 = smul.u32 8, %s16
      %p228 = scmp.lt.s32.totalorder %s227, 15
      %s229 = scalar_select %p228, %s227, 15
      %s230 = smul.addr %s229, 8
      %s231 = scalar_lea.vmem %s5, %s230
      %s232 = smul.u32 8, %s16
      %p233 = scmp.lt.s32.totalorder %s232, 15
      %s234 = scalar_select %p233, %s232, 15
      %s235 = smul.addr %s234, 8
      %s236 = scalar_lea.vmem %s0, %s235
      %s237 = smul.u32 8, %s16
      %s238 = smul.u32 8, %s16
      %p239 = scmp.lt.s32.totalorder %s238, 15
      %s240 = scalar_select %p239, %s238, 15
      %s241 = smul.addr %s240, 8
      %s242 = scalar_lea.vmem %s1, %s241
      %s243 = smul.u32 8, %s16
      %s244 = smul.u32 8, %s16
      %p245 = scmp.lt.s32.totalorder %s244, 15
      %s246 = scalar_select %p245, %s244, 15
      %s247 = smul.addr %s246, 8
      %s248 = scalar_lea.vmem %s5, %s247
      %s249 = smul.u32 8, %s16
      %v250 = vld [vmem:[%s236] sm:$0xff]
      %v251 = vld [vmem:[%s236 + $0x8] sm:$0xff]
      %v252 = vld [vmem:[%s236 + $0x10] sm:$0xff]
      %v253 = vld [vmem:[%s236 + $0x18] sm:$0xff]
      %v254 = vld [vmem:[%s236 + $0x20] sm:$0xff]
      %v255 = vld [vmem:[%s236 + $0x28] sm:$0xff]
      %v256 = vld [vmem:[%s236 + $0x30] sm:$0xff]
      %v257 = vld [vmem:[%s236 + $0x38] sm:$0xff]
      %v258 = vld [vmem:[%s2] sm:$0x1]
      %v260 = vlaneseq
      %v261 = vshrl.u32 %v260, 7
      %v262 = vsub.s32 0, %v261
      %v263 = vrot.slane %v258, %v262
      %v265 = vmul.f32 %v250, %v263
      %v266 = vmul.f32 %v251, %v263
      %v267 = vmul.f32 %v252, %v263
      %v268 = vmul.f32 %v253, %v263
      %v269 = vmul.f32 %v254, %v263
      %v270 = vmul.f32 %v255, %v263
      %v271 = vmul.f32 %v256, %v263
      %v272 = vmul.f32 %v257, %v263
      %v273 = vld [vmem:[%s3] sm:$0x1]
      %v275 = vlaneseq
      %v276 = vshrl.u32 %v275, 7
      %v277 = vsub.s32 0, %v276
      %v278 = vrot.slane %v273, %v277
      %v280 = vadd.f32 %v265, %v278
      %v281 = vadd.f32 %v266, %v278
      %v282 = vadd.f32 %v267, %v278
      %v283 = vadd.f32 %v268, %v278
      %v284 = vadd.f32 %v269, %v278
      %v285 = vadd.f32 %v270, %v278
      %v286 = vadd.f32 %v271, %v278
      %v287 = vadd.f32 %v272, %v278
      %v288 = vld [vmem:[%s242] sm:$0xff]
      %v289 = vld [vmem:[%s242 + $0x8] sm:$0xff]
      %v290 = vld [vmem:[%s242 + $0x10] sm:$0xff]
      %v291 = vld [vmem:[%s242 + $0x18] sm:$0xff]
      %v292 = vld [vmem:[%s242 + $0x20] sm:$0xff]
      %v293 = vld [vmem:[%s242 + $0x28] sm:$0xff]
      %v294 = vld [vmem:[%s242 + $0x30] sm:$0xff]
      %v295 = vld [vmem:[%s242 + $0x38] sm:$0xff]
      %v296 = vld [vmem:[%s4] sm:$0x1]
      %v298 = vlaneseq
      %v299 = vshrl.u32 %v298, 7
      %v300 = vsub.s32 0, %v299
      %v301 = vrot.slane %v296, %v300
      %v303 = vmul.f32 %v288, %v301
      %v304 = vmul.f32 %v289, %v301
      %v305 = vmul.f32 %v290, %v301
      %v306 = vmul.f32 %v291, %v301
      %v307 = vmul.f32 %v292, %v301
      %v308 = vmul.f32 %v293, %v301
      %v309 = vmul.f32 %v294, %v301
      %v310 = vmul.f32 %v295, %v301
      %v311 = vadd.f32 %v280, %v303
      %v312 = vadd.f32 %v281, %v304
      %v313 = vadd.f32 %v282, %v305
      %v314 = vadd.f32 %v283, %v306
      %v315 = vadd.f32 %v284, %v307
      %v316 = vadd.f32 %v285, %v308
      %v317 = vadd.f32 %v286, %v309
      %v318 = vadd.f32 %v287, %v310
      %v319 = vmax.f32 %v311, 0.0
      %v320 = vmax.f32 %v312, 0.0
      %v321 = vmax.f32 %v313, 0.0
      %v322 = vmax.f32 %v314, 0.0
      %v323 = vmax.f32 %v315, 0.0
      %v324 = vmax.f32 %v316, 0.0
      %v325 = vmax.f32 %v317, 0.0
      %v326 = vmax.f32 %v318, 0.0
      %327 = vst [vmem:[%s248] sm:$0xff] %v319
      %328 = vst [vmem:[%s248 + $0x8] sm:$0xff] %v320
      %329 = vst [vmem:[%s248 + $0x10] sm:$0xff] %v321
      %330 = vst [vmem:[%s248 + $0x18] sm:$0xff] %v322
      %331 = vst [vmem:[%s248 + $0x20] sm:$0xff] %v323
      %332 = vst [vmem:[%s248 + $0x28] sm:$0xff] %v324
      %333 = vst [vmem:[%s248 + $0x30] sm:$0xff] %v325
      %334 = vst [vmem:[%s248 + $0x38] sm:$0xff] %v326
      %s335 = smul.u32 8, %s16
      %p336 = scmp.lt.s32.totalorder %s335, 15
      %s337 = scalar_select %p336, %s335, 15
      %s338 = smul.addr %s337, 8
      %s339 = scalar_lea.vmem %s5, %s338
      // Predicated region
      $region41: #{block2d_forward.13} parent=39 // pred_check
        %p340 = pneg %p149
      $region42: #{block2d_forward.13} parent=39 // pred_check_branch
        %342 = sbr.rel (%p340) target = $region44
      $region43: #{block2d_forward.13} parent=39 // pred_region
        %s343 = smul.u32 8, %s16
      $region44: #{block2d_forward.13} parent=39 // pred_fallthru
        _
    $region40: #{block2d_forward.13} parent=5 // pred_fallthru
      _
    %p344 = scmp.le.s32.totalorder 2, %s11
    // Predicated region
    $region45: #{block2d_forward.13} parent=5 // pred_check
      %p345 = pneg %p344
    $region46: #{block2d_forward.13} parent=5 // pred_check_branch
      %347 = sbr.rel (%p345) target = $region48
    $region47: #{block2d_forward.13} parent=5 // pred_region
      %s348 = ssub.s32 %s11, 2
      // Predicated region
      $region49: #{block2d_forward.13} parent=47 // pred_check
        %p349 = pneg %p155
      $region50: #{block2d_forward.13} parent=47 // pred_check_branch
        %351 = sbr.rel (%p349) target = $region52
      $region51: #{block2d_forward.13} parent=47 // pred_region
        %s352 = smul.u32 8, %s17
        %p353 = scmp.lt.s32.totalorder %s352, 15
        %s354 = scalar_select %p353, %s352, 15
        %s355 = smul.addr %s354, 8
        %s356 = scalar_lea.vmem %s5, %s355
      $region52: #{block2d_forward.13} parent=47 // pred_fallthru
        _
    $region48: #{block2d_forward.13} parent=5 // pred_fallthru
      _
  $region6: #{block2d_forward.13} parent=0 // loop_footer
    %s15 = sadd.s32 1, %s11
  $region7: #{block2d_forward.13} parent=0 // loop_footer_branch
    %10 = sbr.rel target = $region3
  $region8: #{block2d_forward.13} parent=0 // loop_exit
    _

</llo_original>
